<compile_context>
chip_gen: v5e
topology: v5e:2x2
jax: 0.10.0
libtpu: 0.0.40
codegen_flags: <defaults>
</compile_context>

<pallas_src>
import functools

import jax
import jax.numpy as jnp
from jax import lax
from jax.experimental import pallas as pl
from jax.experimental.pallas import tpu as pltpu


def _se_kernel(x_ref, w1_ref, b1_ref, w2_ref, b2_ref, out_ref, *,
               inv_l, scale_in_f32):
    """One (TB, C, Lp) batch slab: pool -> FC -> ReLU -> FC -> sigmoid -> scale."""
    # --- squeeze: global average pool over L (f32 accumulation). Padded lanes
    #     are zero and inv_l = 1/true_L, so lane padding never biases the mean.
    pooled = jnp.sum(x_ref[...].astype(jnp.float32), axis=-1) * inv_l     # (TB, C)
    # TODO(synk): if a bundle dump ever shows this XLU lane-reduce on the
    #             critical path, fold it into an MXU matmul against a ones col.

    # --- excitation: Linear -> ReLU -> Linear -> Sigmoid, PyTorch weight layout
    #     (H,C)/(C,H), contracted on the shared axis (no in-kernel transpose).
    dn = (((1,), (1,)), ((), ()))
    h = lax.dot_general(pooled, w1_ref[...].astype(jnp.float32), dn,
                        preferred_element_type=jnp.float32)
    h = jnp.maximum(h + b1_ref[...].astype(jnp.float32), 0.0)            # (TB, H)
    z = lax.dot_general(h, w2_ref[...].astype(jnp.float32), dn,
                        preferred_element_type=jnp.float32)
    z = z + b2_ref[...].astype(jnp.float32)                              # (TB, C)
    # sigmoid: exp on EUP; exact reciprocal (tensor is tiny, keep f32 accuracy)
    s = pl.reciprocal(1.0 + jnp.exp(-z), approx=False)                   # (TB, C)

    # --- scale: per-channel weight broadcast over the lane axis L ---
    if scale_in_f32:
        # v5e (no bf16 VALU) or f32 activations: multiply in f32.
        out_ref[...] = (s[:, :, None] * x_ref[...].astype(jnp.float32)
                        ).astype(out_ref.dtype)
    else:
        # v6e/v7x: scale natively in the activation dtype — halves VALU work
        # and avoids keeping an f32 copy of the slab live in VMEM.
        out_ref[...] = s.astype(out_ref.dtype)[:, :, None] * x_ref[...]


def _tpu_generation():
    """Returns (vmem_capacity_bytes, default_scoped_vmem_bytes, has_bf16_valu)."""
    kind = ""
    try:
        kind = jax.devices()[0].device_kind.lower()
    except Exception:
        pass
    cap = None
    try:
        cap = int(pltpu.get_tpu_info().vmem_capacity_bytes)
    except Exception:
        pass
    newer = any(tok in kind for tok in ("v6", "v7", "trillium"))
    if cap is None:
        if "v7" in kind:
            cap = 64 << 20
        elif kind:
            cap = 128 << 20
        else:
            cap = 64 << 20          # unknown chip: assume the smallest (v7x)
    default_scoped = (32 << 20) if newer else (16 << 20)
    return cap, default_scoped, newer


def _choose_tb(batch, c, lp, itemsize, vmem_budget, weights_bytes):
    """Pick batch-block size TB: ~1-4 MiB per pipelined buffer, grid >= 2,
    divisor of B, and the whole working set under the per-chip VMEM budget."""
    per_batch = c * lp * itemsize
    target = 2 << 20
    tb = max(1, min(batch, target // max(per_batch, 1)))
    if batch >= 2:
        tb = min(tb, max(1, batch // 2))     # keep >= 2 grid steps for v7x megacore
    while batch % tb:                        # snap to a divisor of B (full blocks)
        tb -= 1

    def working_set(t):
        block = t * per_batch
        f32_tmp = t * c * lp * 4 if itemsize < 4 else 0   # transient f32 pool temp
        # x + out, each double-buffered by BlockSpec, + resident weights + slack
        return 4 * block + f32_tmp + weights_bytes + (1 << 20)

    while tb > 1 and working_set(tb) > vmem_budget:
        tb = max(1, tb // 2)
        while batch % tb:
            tb -= 1
    return tb, working_set(tb)


def se_block(x, w1, b1, w2, b2, *, alias_input=False):
    """x: (B, C, L); w1: (H, C); b1: (H,); w2: (C, H); b2: (C,). Returns (B, C, L)."""
    B, C, L = x.shape
    H = w1.shape[0]
    assert w1.shape == (H, C) and w2.shape == (C, H)
    assert b1.shape == (H,) and b2.shape == (C,)

    # Lane-pad L to a multiple of 128 so output stores are unmasked full-lane vst.
    Lp = ((L + 127) // 128) * 128
    x_p = x if Lp == L else jnp.pad(x, ((0, 0), (0, 0), (0, Lp - L)))

    itemsize = jnp.dtype(x.dtype).itemsize
    vmem_cap, default_scoped, bf16_valu = _tpu_generation()
    vmem_budget = vmem_cap - max(vmem_cap // 8, 8 << 20)   # leave compiler headroom

    weights_bytes = 4 * (H * C + H + C * H + C)
    tb, working_set = _choose_tb(B, C, Lp, itemsize, vmem_budget, weights_bytes)
    # TODO(synk): if tb == 1 still overflows vmem_budget (huge C*L on v7x), switch
    #             to an L-tiled two-phase kernel instead of forcing tiny blocks.

    vmem_limit = None
    if working_set > default_scoped:
        vmem_limit = int(min(working_set + (4 << 20), vmem_budget))

    scale_in_f32 = (itemsize >= 4) or (not bf16_valu)

    kernel = functools.partial(_se_kernel, inv_l=1.0 / L,
                               scale_in_f32=scale_in_f32)

    out = pl.pallas_call(
        kernel,
        out_shape=jax.ShapeDtypeStruct((B, C, Lp), x.dtype),
        grid=(B // tb,),
        in_specs=[
            pl.BlockSpec((tb, C, Lp), lambda b: (b, 0, 0)),   # x slab (pipelined over B)
            pl.BlockSpec((H, C), lambda b: (0, 0)),           # W1 (resident, tiny)
            pl.BlockSpec((1, H), lambda b: (0, 0)),           # b1
            pl.BlockSpec((C, H), lambda b: (0, 0)),           # W2
            pl.BlockSpec((1, C), lambda b: (0, 0)),           # b2
        ],
        out_specs=pl.BlockSpec((tb, C, Lp), lambda b: (b, 0, 0)),
        compiler_params=pltpu.CompilerParams(
            dimension_semantics=("parallel",),                # slabs across v7x's 2 TCs
            vmem_limit_bytes=vmem_limit,
        ),
        input_output_aliases={0: 0} if (alias_input and Lp == L) else {},
    )(x_p, w1, b1.reshape(1, H), w2, b2.reshape(1, C))

    return out if Lp == L else out[:, :, :L]


def _reference(x, w1, b1, w2, b2):
    """Plain-JAX reference mirroring the PyTorch SEblock math (f32 throughout)."""
    xf = x.astype(jnp.float32)
    pooled = jnp.mean(xf, axis=-1)
    dn = (((1,), (1,)), ((), ()))
    h = lax.dot_general(pooled, w1, dn, preferred_element_type=jnp.float32) + b1
    h = jnp.maximum(h, 0.0)
    z = lax.dot_general(h, w2, dn, preferred_element_type=jnp.float32) + b2
    s = 1.0 / (1.0 + jnp.exp(-z))
    return s[:, :, None] * xf


if __name__ == "__main__":
    # SEblock(channel=C, r=0.5) as instantiated inside AFP(32) of PoseNetFeat.
    B, C, L = 4, 32, 256
    r = 0.5
    H = int(C * r)

    key = jax.random.PRNGKey(0)
    kx, k1, k2, k3, k4 = jax.random.split(key, 5)
    x = jax.random.normal(kx, (B, C, L), dtype=jnp.float32)
    # PyTorch Linear parameter shapes: (out_features, in_features) + (out_features,)
    w1 = jax.random.normal(k1, (H, C), dtype=jnp.float32) * 0.1
    b1 = jax.random.normal(k2, (H,), dtype=jnp.float32) * 0.1
    w2 = jax.random.normal(k3, (C, H), dtype=jnp.float32) * 0.1
    b2 = jax.random.normal(k4, (C,), dtype=jnp.float32) * 0.1

    # f32 activations, lane-aligned L (TB=2 -> grid of 2 parallel slabs)
    out = jax.block_until_ready(se_block(x, w1, b1, w2, b2))
    ref = _reference(x, w1, b1, w2, b2)
    assert out.shape == (B, C, L) and out.dtype == jnp.float32
    assert jnp.allclose(out, ref, atol=2e-5, rtol=2e-5)

    # bf16 activation I/O (halves HBM traffic); params stay f32, pool/FCs in f32,
    # final scale in bf16 on v6e/v7x (f32 fallback elsewhere).
    out_bf16 = jax.block_until_ready(se_block(x.astype(jnp.bfloat16), w1, b1, w2, b2))
    assert out_bf16.dtype == jnp.bfloat16
    assert jnp.allclose(out_bf16.astype(jnp.float32), ref, atol=5e-2, rtol=5e-2)

    # Non-multiple-of-128 num_points (DenseFusion-style) exercises the lane-pad
    # path: padded to 256 internally, mean divided by true L, output sliced back.
    L2 = 200
    x2 = jax.random.normal(kx, (B, C, L2), dtype=jnp.float32)
    out2 = jax.block_until_ready(se_block(x2, w1, b1, w2, b2))
    ref2 = _reference(x2, w1, b1, w2, b2)
    assert out2.shape == (B, C, L2)
    assert jnp.allclose(out2, ref2, atol=2e-5, rtol=2e-5)

    print("KERNEL_OK")
</pallas_src>

<mosaic_0001>
module attributes {stable_mosaic.version = 11 : i64} {
  func.func @_se_kernel(%arg0: i32, %arg1: memref<2x32x256xf32, #tpu.memory_space<vmem>>, %arg2: memref<16x32xf32, #tpu.memory_space<vmem>>, %arg3: memref<1x16xf32, #tpu.memory_space<vmem>>, %arg4: memref<32x16xf32, #tpu.memory_space<vmem>>, %arg5: memref<1x32xf32, #tpu.memory_space<vmem>>, %arg6: memref<2x32x256xf32, #tpu.memory_space<vmem>>) attributes {dimension_semantics = [#tpu.dimension_semantics<parallel>], iteration_bounds = array<i64: 2>, scalar_prefetch = 0 : i64, scratch_operands = 0 : i64, tpu.core_type = #tpu.core_type<tc>, window_params = [{transform_indices = @transform_0, window_bounds = array<i64: 2, 32, 256>}, {pipeline_mode = #tpu.pipeline_mode<synchronous>, transform_indices = @transform_1, window_bounds = array<i64: 16, 32>}, {pipeline_mode = #tpu.pipeline_mode<synchronous>, transform_indices = @transform_2, window_bounds = array<i64: 1, 16>}, {pipeline_mode = #tpu.pipeline_mode<synchronous>, transform_indices = @transform_3, window_bounds = array<i64: 32, 16>}, {pipeline_mode = #tpu.pipeline_mode<synchronous>, transform_indices = @transform_4, window_bounds = array<i64: 1, 32>}, {transform_indices = @transform_5, window_bounds = array<i64: 2, 32, 256>}]} {
    %c0 = arith.constant 0 : index
    %c0_0 = arith.constant 0 : index
    %c0_1 = arith.constant 0 : index
    %0 = vector.load %arg1[%c0, %c0_0, %c0_1] : memref<2x32x256xf32, #tpu.memory_space<vmem>>, vector<2x32x256xf32>
    %cst = arith.constant dense<0.000000e+00> : vector<2x32xf32>
    %1 = vector.multi_reduction <add>, %0, %cst [2] : vector<2x32x256xf32> to vector<2x32xf32>
    %cst_2 = arith.constant 3.906250e-03 : f32
    %2 = vector.broadcast %cst_2 : f32 to vector<2x32xf32>
    %3 = arith.mulf %1, %2 : vector<2x32xf32>
    %c0_3 = arith.constant 0 : index
    %c0_4 = arith.constant 0 : index
    %4 = vector.load %arg2[%c0_3, %c0_4] : memref<16x32xf32, #tpu.memory_space<vmem>>, vector<16x32xf32>
    %cst_5 = arith.constant dense<0.000000e+00> : vector<2x16xf32>
    %5 = tpu.matmul %3, %4, %cst_5 {dimension_numbers = #tpu.dot_dimension_numbers<[1], [1], [0], [0], [0, 0, 1, 0], [], []>} : vector<2x32xf32>, vector<16x32xf32>, vector<2x16xf32> -> vector<2x16xf32>
    %c0_6 = arith.constant 0 : index
    %c0_7 = arith.constant 0 : index
    %6 = vector.load %arg3[%c0_6, %c0_7] : memref<1x16xf32, #tpu.memory_space<vmem>>, vector<1x16xf32>
    %7 = vector.broadcast %6 : vector<1x16xf32> to vector<2x16xf32>
    %8 = arith.addf %5, %7 : vector<2x16xf32>
    %cst_8 = arith.constant 0.000000e+00 : f32
    %9 = vector.broadcast %cst_8 : f32 to vector<2x16xf32>
    %10 = arith.maximumf %8, %9 : vector<2x16xf32>
    %c0_9 = arith.constant 0 : index
    %c0_10 = arith.constant 0 : index
    %11 = vector.load %arg4[%c0_9, %c0_10] : memref<32x16xf32, #tpu.memory_space<vmem>>, vector<32x16xf32>
    %cst_11 = arith.constant dense<0.000000e+00> : vector<2x32xf32>
    %12 = tpu.matmul %10, %11, %cst_11 {dimension_numbers = #tpu.dot_dimension_numbers<[1], [1], [0], [0], [0, 0, 1, 0], [], []>} : vector<2x16xf32>, vector<32x16xf32>, vector<2x32xf32> -> vector<2x32xf32>
    %c0_12 = arith.constant 0 : index
    %c0_13 = arith.constant 0 : index
    %13 = vector.load %arg5[%c0_12, %c0_13] : memref<1x32xf32, #tpu.memory_space<vmem>>, vector<1x32xf32>
    %14 = vector.broadcast %13 : vector<1x32xf32> to vector<2x32xf32>
    %15 = arith.addf %12, %14 : vector<2x32xf32>
    %cst_14 = arith.constant 0.000000e+00 : f32
    %16 = vector.broadcast %cst_14 : f32 to vector<2x32xf32>
    %17 = arith.subf %16, %15 : vector<2x32xf32>
    %18 = math.exp %17 : vector<2x32xf32>
    %cst_15 = arith.constant 1.000000e+00 : f32
    %19 = vector.broadcast %cst_15 : f32 to vector<2x32xf32>
    %20 = arith.addf %19, %18 : vector<2x32xf32>
    %21 = tpu.reciprocal %20 : vector<2x32xf32> -> vector<2x32xf32>
    %22 = vector.shape_cast %21 : vector<2x32xf32> to vector<2x32x1xf32>
    %c0_16 = arith.constant 0 : index
    %c0_17 = arith.constant 0 : index
    %c0_18 = arith.constant 0 : index
    %23 = vector.load %arg1[%c0_16, %c0_17, %c0_18] : memref<2x32x256xf32, #tpu.memory_space<vmem>>, vector<2x32x256xf32>
    %24 = vector.broadcast %22 : vector<2x32x1xf32> to vector<2x32x256xf32>
    %25 = arith.mulf %24, %23 : vector<2x32x256xf32>
    %c0_19 = arith.constant 0 : index
    %c0_20 = arith.constant 0 : index
    %c0_21 = arith.constant 0 : index
    %26 = vector.load %arg6[%c0_19, %c0_20, %c0_21] : memref<2x32x256xf32, #tpu.memory_space<vmem>>, vector<2x32x256xf32>
    tpu.vector_store %arg6[%c0_19, %c0_20, %c0_21], %25 {strides = array<i32>} : memref<2x32x256xf32, #tpu.memory_space<vmem>>, vector<2x32x256xf32>,
    return
  }
  func.func @transform_0(%arg0: i32) -> (i32, i32, i32) {
    %c0_i32 = arith.constant 0 : i32
    %c0_i32_0 = arith.constant 0 : i32
    %c0_i32_1 = arith.constant 0 : i32
    return %arg0, %c0_i32, %c0_i32_0 : i32, i32, i32
  }
  func.func @transform_1(%arg0: i32) -> (i32, i32) {
    %c0_i32 = arith.constant 0 : i32
    %c0_i32_0 = arith.constant 0 : i32
    %c0_i32_1 = arith.constant 0 : i32
    return %c0_i32, %c0_i32_0 : i32, i32
  }
  func.func @transform_2(%arg0: i32) -> (i32, i32) {
    %c0_i32 = arith.constant 0 : i32
    %c0_i32_0 = arith.constant 0 : i32
    %c0_i32_1 = arith.constant 0 : i32
    return %c0_i32, %c0_i32_0 : i32, i32
  }
  func.func @transform_3(%arg0: i32) -> (i32, i32) {
    %c0_i32 = arith.constant 0 : i32
    %c0_i32_0 = arith.constant 0 : i32
    %c0_i32_1 = arith.constant 0 : i32
    return %c0_i32, %c0_i32_0 : i32, i32
  }
  func.func @transform_4(%arg0: i32) -> (i32, i32) {
    %c0_i32 = arith.constant 0 : i32
    %c0_i32_0 = arith.constant 0 : i32
    %c0_i32_1 = arith.constant 0 : i32
    return %c0_i32, %c0_i32_0 : i32, i32
  }
  func.func @transform_5(%arg0: i32) -> (i32, i32, i32) {
    %c0_i32 = arith.constant 0 : i32
    %c0_i32_0 = arith.constant 0 : i32
    %c0_i32_1 = arith.constant 0 : i32
    return %arg0, %c0_i32, %c0_i32_0 : i32, i32, i32
  }
}

</mosaic_0001>

<llo_original>
// kernel: tpu_custom_call.1
$region0: #{tpu_custom_call.1}
  #allocation0 [shape = 'u32[]', space=smem, size = 0x4, offset = 0x4, fixed_abs, tag = 'smem constant byte address 0x4 - core index']
  #allocation1 [shape = 'u32[72,128]{1,0:T(1,128)}', space=vmem, size = 0x9000, scoped, tag = 'internal scratch']
  %s0 = inlined_call_operand.hbm [shape: f32[4,32,256], index: 0, kind: input, shape index: {}]
  %s1 = inlined_call_operand.vmem [shape: f32[16,32], index: 1, kind: input, shape index: {}]
  %s2 = inlined_call_operand.vmem [shape: f32[1,16], index: 2, kind: input, shape index: {}]
  %s3 = inlined_call_operand.vmem [shape: f32[32,16], index: 3, kind: input, shape index: {}]
  %s4 = inlined_call_operand.vmem [shape: f32[1,32], index: 4, kind: input, shape index: {}]
  %s5 = inlined_call_operand.hbm [shape: f32[4,32,256], index: 5, kind: output, shape index: {}]
  %s6 = sld [smem:[#allocation0]]
  $region57: #{tpu_custom_call.1} parent=0
    _
  %s8 = ssub.s32 1, %s6
  %s9 = scalar_select 0, %s8, %s6
  $region1: #{tpu_custom_call.1} parent=0
    #allocation2 [shape = 'u8[131072]{0}', space=vmem, size = 0x20000, scoped, tag = 'input window, operand 0']
    #allocation3 [shape = 's32[2]{0}', space=sflag, size = 0x8, scoped, tag = 'scoped memory for tpu_custom_call.1']
    #allocation4 [shape = 's32[2]{0}', space=sflag, size = 0x8, scoped, tag = 'scoped memory for tpu_custom_call.1']
    #allocation5 [shape = 'u8[131072]{0}', space=vmem, size = 0x20000, scoped, tag = 'output window, operand 0']
    %10 = vsyncpa [#allocation3], 0
    %s11 = scalar_lea.sflag [#allocation3], 1
    %12 = vsyncpa %s11, 0
    %13 = vsyncpa [#allocation4], 0
    %s14 = scalar_lea.sflag [#allocation4], 1
    %15 = vsyncpa %s14, 0
    loop: start=0, step=1, limit=4
    $region2: #{tpu_custom_call.1} parent=1 // loop_pre_header
      _
    $region3: #{tpu_custom_call.1} parent=1 // loop_header
      %s17 = sphi 0, %s21
      %p18 = scmp.ge.s32.totalorder %s17, 4
      %s27 = sphi 0, %s29
      %s30 = sphi 0, %s27
      %s31 = sphi 0, %s30
      %s47 = sphi 0, %s31
      %s51 = sphi 0, %s51
      %s53 = sphi 0, %s51
      %s54 = sphi 0, %s53
      %s68 = sphi 0, %s54
      %s72 = sphi 0, %s72
      %s74 = sphi 0, %s72
      %s75 = sphi 0, %s74
      %s89 = sphi 0, %s75
      %s93 = sphi 0, %s93
      %s95 = sphi 0, %s93
      %s96 = sphi 0, %s95
      %s110 = sphi 0, %s96
      %s114 = sphi 0, %s114
      %s116 = sphi 0, %s114
      %s117 = sphi 0, %s116
      %s131 = sphi 0, %s117
      %s137 = sphi 0, %s139
      %s140 = sphi 0, %s137
      %s141 = sphi 0, %s140
      %s157 = sphi 0, %s141
    $region4: #{tpu_custom_call.1} parent=1 // loop_header_branch
      %20 = sbr.rel (%p18) target = $region8
    $region5: #{tpu_custom_call.1} parent=1 // loop_body
      %s22 = ssub.s32 %s17, 1
      %s23 = ssub.s32 %s17, 2
      %s24 = sadd.s32 %s17, 1
      %s25 = ssub.s32 %s17, %s24
      %p26 = scmp.eq.s32.totalorder %s25, 0
      %s28 = sadd.s32 %s27, 1
      %s29 = scalar_select %p26, %s27, %s28
      %p32 = pneg %p26
      %p33 = scmp.eq.s32.totalorder %s17, 1
      %p34 = por %p32, %p33
      %p35 = scmp.ne.s32.totalorder %s27, %s30
      %p36 = scmp.eq.s32.totalorder %s17, 0
      %p37 = por %p35, %p36
      %p38 = scmp.ne.s32.totalorder %s27, %s30
      %p39 = scmp.eq.s32.totalorder %s22, 1
      %p40 = por %p38, %p39
      %p41 = scmp.ne.s32.totalorder %s30, %s31
      %p42 = scmp.eq.s32.totalorder %s22, 0
      %p43 = por %p41, %p42
      %p44 = scmp.ne.s32.totalorder %s30, %s31
      %p45 = scmp.eq.s32.totalorder %s23, 1
      %p46 = por %p44, %p45
      %p48 = scmp.ne.s32.totalorder %s31, %s47
      %p49 = scmp.eq.s32.totalorder %s23, 0
      %p50 = por %p48, %p49
      %s52 = sadd.s32 %s51, 1
      %p55 = scmp.eq.s32.totalorder %s17, 1
      %p56 = scmp.ne.s32.totalorder %s51, %s53
      %p57 = scmp.eq.s32.totalorder %s17, 0
      %p58 = por %p56, %p57
      %p59 = scmp.ne.s32.totalorder %s51, %s53
      %p60 = scmp.eq.s32.totalorder %s22, 1
      %p61 = por %p59, %p60
      %p62 = scmp.ne.s32.totalorder %s53, %s54
      %p63 = scmp.eq.s32.totalorder %s22, 0
      %p64 = por %p62, %p63
      %p65 = scmp.ne.s32.totalorder %s53, %s54
      %p66 = scmp.eq.s32.totalorder %s23, 1
      %p67 = por %p65, %p66
      %p69 = scmp.ne.s32.totalorder %s54, %s68
      %p70 = scmp.eq.s32.totalorder %s23, 0
      %p71 = por %p69, %p70
      %s73 = sadd.s32 %s72, 1
      %p76 = scmp.eq.s32.totalorder %s17, 1
      %p77 = scmp.ne.s32.totalorder %s72, %s74
      %p78 = scmp.eq.s32.totalorder %s17, 0
      %p79 = por %p77, %p78
      %p80 = scmp.ne.s32.totalorder %s72, %s74
      %p81 = scmp.eq.s32.totalorder %s22, 1
      %p82 = por %p80, %p81
      %p83 = scmp.ne.s32.totalorder %s74, %s75
      %p84 = scmp.eq.s32.totalorder %s22, 0
      %p85 = por %p83, %p84
      %p86 = scmp.ne.s32.totalorder %s74, %s75
      %p87 = scmp.eq.s32.totalorder %s23, 1
      %p88 = por %p86, %p87
      %p90 = scmp.ne.s32.totalorder %s75, %s89
      %p91 = scmp.eq.s32.totalorder %s23, 0
      %p92 = por %p90, %p91
      %s94 = sadd.s32 %s93, 1
      %p97 = scmp.eq.s32.totalorder %s17, 1
      %p98 = scmp.ne.s32.totalorder %s93, %s95
      %p99 = scmp.eq.s32.totalorder %s17, 0
      %p100 = por %p98, %p99
      %p101 = scmp.ne.s32.totalorder %s93, %s95
      %p102 = scmp.eq.s32.totalorder %s22, 1
      %p103 = por %p101, %p102
      %p104 = scmp.ne.s32.totalorder %s95, %s96
      %p105 = scmp.eq.s32.totalorder %s22, 0
      %p106 = por %p104, %p105
      %p107 = scmp.ne.s32.totalorder %s95, %s96
      %p108 = scmp.eq.s32.totalorder %s23, 1
      %p109 = por %p107, %p108
      %p111 = scmp.ne.s32.totalorder %s96, %s110
      %p112 = scmp.eq.s32.totalorder %s23, 0
      %p113 = por %p111, %p112
      %s115 = sadd.s32 %s114, 1
      %p118 = scmp.eq.s32.totalorder %s17, 1
      %p119 = scmp.ne.s32.totalorder %s114, %s116
      %p120 = scmp.eq.s32.totalorder %s17, 0
      %p121 = por %p119, %p120
      %p122 = scmp.ne.s32.totalorder %s114, %s116
      %p123 = scmp.eq.s32.totalorder %s22, 1
      %p124 = por %p122, %p123
      %p125 = scmp.ne.s32.totalorder %s116, %s117
      %p126 = scmp.eq.s32.totalorder %s22, 0
      %p127 = por %p125, %p126
      %p128 = scmp.ne.s32.totalorder %s116, %s117
      %p129 = scmp.eq.s32.totalorder %s23, 1
      %p130 = por %p128, %p129
      %p132 = scmp.ne.s32.totalorder %s117, %s131
      %p133 = scmp.eq.s32.totalorder %s23, 0
      %p134 = por %p132, %p133
      %s135 = ssub.s32 %s17, %s24
      %p136 = scmp.eq.s32.totalorder %s135, 0
      %s138 = sadd.s32 %s137, 1
      %s139 = scalar_select %p136, %s137, %s138
      %p142 = pneg %p136
      %p143 = scmp.eq.s32.totalorder %s17, 1
      %p144 = por %p142, %p143
      %p145 = scmp.ne.s32.totalorder %s137, %s140
      %p146 = scmp.eq.s32.totalorder %s17, 0
      %p147 = por %p145, %p146
      %p148 = scmp.ne.s32.totalorder %s137, %s140
      %p149 = scmp.eq.s32.totalorder %s22, 1
      %p150 = por %p148, %p149
      %p151 = scmp.ne.s32.totalorder %s140, %s141
      %p152 = scmp.eq.s32.totalorder %s22, 0
      %p153 = por %p151, %p152
      %p154 = scmp.ne.s32.totalorder %s140, %s141
      %p155 = scmp.eq.s32.totalorder %s23, 1
      %p156 = por %p154, %p155
      %p158 = scmp.ne.s32.totalorder %s141, %s157
      %p159 = scmp.eq.s32.totalorder %s23, 0
      %p160 = por %p158, %p159
      %p161 = scmp.le.s32.totalorder 1, %s17
      %p162 = scmp.lt.s32.totalorder %s17, 3
      %p163 = pnand %p161, %p162
      %p164 = pneg %p163
      // Predicated region
      $region9: #{tpu_custom_call.1} parent=5 // pred_check
        _
      $region10: #{tpu_custom_call.1} parent=5 // pred_check_branch
        %166 = sbr.rel (%p163) target = $region12
      $region11: #{tpu_custom_call.1} parent=5 // pred_region
        %s167 = ssub.s32 %s17, 1
        // Predicated region
        $region13: #{tpu_custom_call.1} parent=11 // pred_check
          %p168 = pneg %p64
        $region14: #{tpu_custom_call.1} parent=11 // pred_check_branch
          %170 = sbr.rel (%p168) target = $region16
        $region15: #{tpu_custom_call.1} parent=11 // pred_region
          _
        $region16: #{tpu_custom_call.1} parent=11 // pred_fallthru
          _
        // Predicated region
        $region17: #{tpu_custom_call.1} parent=11 // pred_check
          %p171 = pneg %p85
        $region18: #{tpu_custom_call.1} parent=11 // pred_check_branch
          %173 = sbr.rel (%p171) target = $region20
        $region19: #{tpu_custom_call.1} parent=11 // pred_region
          _
        $region20: #{tpu_custom_call.1} parent=11 // pred_fallthru
          _
        // Predicated region
        $region21: #{tpu_custom_call.1} parent=11 // pred_check
          %p174 = pneg %p106
        $region22: #{tpu_custom_call.1} parent=11 // pred_check_branch
          %176 = sbr.rel (%p174) target = $region24
        $region23: #{tpu_custom_call.1} parent=11 // pred_region
          _
        $region24: #{tpu_custom_call.1} parent=11 // pred_fallthru
          _
        // Predicated region
        $region25: #{tpu_custom_call.1} parent=11 // pred_check
          %p177 = pneg %p127
        $region26: #{tpu_custom_call.1} parent=11 // pred_check_branch
          %179 = sbr.rel (%p177) target = $region28
        $region27: #{tpu_custom_call.1} parent=11 // pred_region
          _
        $region28: #{tpu_custom_call.1} parent=11 // pred_fallthru
          _
      $region12: #{tpu_custom_call.1} parent=5 // pred_fallthru
        _
      %p180 = scmp.lt.s32.totalorder %s17, 2
      // Predicated region
      $region29: #{tpu_custom_call.1} parent=5 // pred_check
        %p181 = pneg %p180
      $region30: #{tpu_custom_call.1} parent=5 // pred_check_branch
        %183 = sbr.rel (%p181) target = $region32
      $region31: #{tpu_custom_call.1} parent=5 // pred_region
        // Predicated region
        $region33: #{tpu_custom_call.1} parent=31 // pred_check
          %p184 = pneg %p37
        $region34: #{tpu_custom_call.1} parent=31 // pred_check_branch
          %186 = sbr.rel (%p184) target = $region36
        $region35: #{tpu_custom_call.1} parent=31 // pred_region
          %s187 = sand.u32 %s27, 1
          %s188 = scalar_lea.sflag [#allocation3], %s187
          %s189 = sand.u32 %s27, 1
          %s190 = smul.addr %s189, 128
          %s191 = scalar_lea.vmem [#allocation2], %s190
          %s192 = smul.u32 2, %s17
          %194 = vsyncadd %s188, 0
          %s195 = smul.addr %s192, 8
          %s196 = smul.addr %s195, 8
          %s197 = scalar_lea.hbm %s0, %s196
          %s198 = sshll.u32 %s197, 4
          %s199 = int_to_ptr.hbm [resolvable:$true] %s198
          %s200 = sshll.u32 %s191, 4
          %s201 = int_to_ptr.vmem [resolvable:$true] %s200
          %206 = dma.hbm_to_vmem [thread:$0]  %s199, 2048, %s201, %s188, 256, 256, 16
        $region36: #{tpu_custom_call.1} parent=31 // pred_fallthru
          _
      $region32: #{tpu_custom_call.1} parent=5 // pred_fallthru
        _
      %p207 = scmp.le.s32.totalorder 1, %s17
      %p208 = scmp.lt.s32.totalorder %s17, 3
      %p209 = pnand %p207, %p208
      %p210 = pneg %p209
      // Predicated region
      $region37: #{tpu_custom_call.1} parent=5 // pred_check
        _
      $region38: #{tpu_custom_call.1} parent=5 // pred_check_branch
        %212 = sbr.rel (%p209) target = $region40
      $region39: #{tpu_custom_call.1} parent=5 // pred_region
        %s213 = ssub.s32 %s17, 1
        %s214 = sand.u32 %s30, 1
        %s215 = scalar_lea.sflag [#allocation3], %s214
        %s216 = sand.u32 %s30, 1
        %s217 = smul.addr %s216, 128
        %s218 = scalar_lea.vmem [#allocation2], %s217
        // Predicated region
        $region41: #{tpu_custom_call.1} parent=39 // pred_check
          %p219 = pneg %p43
        $region42: #{tpu_custom_call.1} parent=39 // pred_check_branch
          %221 = sbr.rel (%p219) target = $region44
        $region43: #{tpu_custom_call.1} parent=39 // pred_region
          %223 = dma.done %s215, 2048
        $region44: #{tpu_custom_call.1} parent=39 // pred_fallthru
          _
        %s224 = sand.u32 %s30, 1
        %s225 = scalar_lea.sflag [#allocation3], %s224
        %s226 = sand.u32 %s30, 1
        %s227 = smul.addr %s226, 128
        %s228 = scalar_lea.vmem [#allocation2], %s227
        %p229 = pneg %p43
        %p230 = pneg %p40
        %p231 = pneg %p64
        %p232 = pneg %p61
        %p233 = pneg %p85
        %p234 = pneg %p82
        %p235 = pneg %p106
        %p236 = pneg %p103
        %p237 = pneg %p127
        %p238 = pneg %p124
        %p239 = pneg %p153
        %p240 = pneg %p150
        %s241 = sand.u32 %s140, 1
        %s242 = scalar_lea.sflag [#allocation4], %s241
        %s243 = sand.u32 %s140, 1
        %s244 = smul.addr %s243, 128
        %s245 = scalar_lea.vmem [#allocation5], %s244
        %s246 = smul.u32 2, %s22
        %s247 = smul.u32 2, %s22
        %v248 = vld [vmem:[%s218] sm:$0xff]
        %v249 = vld [vmem:[%s218 + $0x8] sm:$0xff]
        %v250 = vld [vmem:[%s218 + $0x10] sm:$0xff]
        %v251 = vld [vmem:[%s218 + $0x18] sm:$0xff]
        %v252 = vld [vmem:[%s218 + $0x20] sm:$0xff]
        %v253 = vld [vmem:[%s218 + $0x28] sm:$0xff]
        %v254 = vld [vmem:[%s218 + $0x30] sm:$0xff]
        %v255 = vld [vmem:[%s218 + $0x38] sm:$0xff]
        %v256 = vld [vmem:[%s218 + $0x40] sm:$0xff]
        %v257 = vld [vmem:[%s218 + $0x48] sm:$0xff]
        %v258 = vld [vmem:[%s218 + $0x50] sm:$0xff]
        %v259 = vld [vmem:[%s218 + $0x58] sm:$0xff]
        %v260 = vld [vmem:[%s218 + $0x60] sm:$0xff]
        %v261 = vld [vmem:[%s218 + $0x68] sm:$0xff]
        %v262 = vld [vmem:[%s218 + $0x70] sm:$0xff]
        %v263 = vld [vmem:[%s218 + $0x78] sm:$0xff]
        %v264 = vadd.f32 %v248, %v249
        %265 = vadd.xlane.f32.xlu0 %v264
        %v266 = vpop.xlane.xlu0 %265
        %v267 = vadd.f32 %v250, %v251
        %268 = vadd.xlane.f32.xlu0 %v267
        %v269 = vpop.xlane.xlu0 %268
        %v270 = vadd.f32 %v252, %v253
        %271 = vadd.xlane.f32.xlu0 %v270
        %v272 = vpop.xlane.xlu0 %271
        %v273 = vadd.f32 %v254, %v255
        %274 = vadd.xlane.f32.xlu0 %v273
        %v275 = vpop.xlane.xlu0 %274
        %v276 = vadd.f32 %v256, %v257
        %277 = vadd.xlane.f32.xlu0 %v276
        %v278 = vpop.xlane.xlu0 %277
        %v279 = vadd.f32 %v258, %v259
        %280 = vadd.xlane.f32.xlu0 %v279
        %v281 = vpop.xlane.xlu0 %280
        %v282 = vadd.f32 %v260, %v261
        %283 = vadd.xlane.f32.xlu0 %v282
        %v284 = vpop.xlane.xlu0 %283
        %v285 = vadd.f32 %v262, %v263
        %286 = vadd.xlane.f32.xlu0 %v285
        %v287 = vpop.xlane.xlu0 %286
        %v288 = vmul.f32 %v266, 0.00390625
        %v289 = vmul.f32 %v269, 0.00390625
        %v290 = vmul.f32 %v272, 0.00390625
        %v291 = vmul.f32 %v275, 0.00390625
        %v292 = vmul.f32 %v278, 0.00390625
        %v293 = vmul.f32 %v281, 0.00390625
        %v294 = vmul.f32 %v284, 0.00390625
        %v295 = vmul.f32 %v287, 0.00390625
        %v296 = vld [vmem:[%s1] sm:$0xff]
        %v297 = vld [vmem:[%s1 + $0x8] sm:$0xff]
        %v298 = vld [vmem:[%s2] sm:$0x1]
        %v300 = vperm.slane %v298, 0
        %v310 = vlaneseq
        %v311 = vand.u32 %v310, 127
        %v312 = vperm.slane %v288, %v311
        %v313 = vadd.s32 %v311, 4294967288
        %v314 = vperm.slane %v289, %v313
        %vm315 = vcmask 130112
        %v316 = vsel %vm315, %v314, %v312
        %v317 = vadd.s32 %v311, 4294967280
        %v318 = vperm.slane %v290, %v317
        %vm319 = vcmask 195712
        %v320 = vsel %vm319, %v318, %v316
        %v321 = vadd.s32 %v311, 4294967272
        %v322 = vperm.slane %v291, %v321
        %vm323 = vcmask 261312
        %v324 = vsel %vm323, %v322, %v320
        %v325 = vperm.slane %v292, %v311
        %v326 = vperm.slane %v293, %v313
        %v327 = vsel %vm315, %v326, %v325
        %v328 = vperm.slane %v294, %v317
        %v329 = vsel %vm319, %v328, %v327
        %v330 = vperm.slane %v295, %v321
        %v331 = vsel %vm323, %v330, %v329
        %vm332 = vcmask 1041409
        %v333 = vsel %vm332, %v331, %v324
        %vm334 = vcmask 261120
        %v335 = vsel %vm334, %v333, 0
        %v338 = vsel %vm334, %v296, 0
        %v341 = vsel %vm334, %v297, 0
        %343 = vmatpush.xpose.msra.mxu0 0.0
        %344 = vmatpush.xpose.msra.mxu0 0.0
        %345 = vmatpush.xpose.msra.mxu0 0.0
        %346 = vmatpush.xpose.msra.mxu0 0.0
        %347 = vmatpush.xpose.msra.mxu0 0.0
        %348 = vmatpush.xpose.msra.mxu0 0.0
        %349 = vmatpush.xpose.msra.mxu0 0.0
        %350 = vmatpush.xpose.msra.mxu0 0.0
        %351 = vmatpush.xpose.msra.mxu0 0.0
        %352 = vmatpush.xpose.msra.mxu0 0.0
        %353 = vmatpush.xpose.msra.mxu0 0.0
        %354 = vmatpush.xpose.msra.mxu0 0.0
        %355 = vmatpush.xpose.msra.mxu0 0.0
        %356 = vmatpush.xpose.msra.mxu0 0.0
        %357 = vmatpush.xpose.msra.mxu0 %v341
        %358 = vmatpush.xpose.msra.mxu0 %v338
        %359 = vmatmul.f32.gmra.mxu0 %v335
        %v360 = vpop.f32.mrf.mxu0
        %v361 = vadd.f32 %v300, %v360
        %362 = vdwg.mxu0
        %v363 = vmax.f32 %v361, 0.0
        %v364 = vld [vmem:[%s3] sm:$0xff]
        %v365 = vld [vmem:[%s3 + $0x8] sm:$0xff]
        %v366 = vld [vmem:[%s3 + $0x10] sm:$0xff]
        %v367 = vld [vmem:[%s3 + $0x18] sm:$0xff]
        %v368 = vld [vmem:[%s4] sm:$0x1]
        %v370 = vperm.slane %v368, 0
        %vm372 = vcmask 130048
        %v374 = vsel %vm372, %v363, 0
        %v377 = vsel %vm372, %v364, 0
        %v380 = vsel %vm372, %v365, 0
        %v383 = vsel %vm372, %v366, 0
        %v386 = vsel %vm372, %v367, 0
        %388 = vmatpush.xpose.msra.mxu0 0.0
        %389 = vmatpush.xpose.msra.mxu0 0.0
        %390 = vmatpush.xpose.msra.mxu0 0.0
        %391 = vmatpush.xpose.msra.mxu0 0.0
        %392 = vmatpush.xpose.msra.mxu0 0.0
        %393 = vmatpush.xpose.msra.mxu0 0.0
        %394 = vmatpush.xpose.msra.mxu0 0.0
        %395 = vmatpush.xpose.msra.mxu0 0.0
        %396 = vmatpush.xpose.msra.mxu0 0.0
        %397 = vmatpush.xpose.msra.mxu0 0.0
        %398 = vmatpush.xpose.msra.mxu0 0.0
        %399 = vmatpush.xpose.msra.mxu0 0.0
        %400 = vmatpush.xpose.msra.mxu0 %v386
        %401 = vmatpush.xpose.msra.mxu0 %v383
        %402 = vmatpush.xpose.msra.mxu0 %v380
        %403 = vmatpush.xpose.msra.mxu0 %v377
        %404 = vmatmul.f32.gmra.mxu0 %v374
        %v405 = vpop.f32.mrf.mxu0
        %v406 = vadd.f32 %v370, %v405
        %407 = vdwg.mxu0
        %v408 = vsub.f32 0.0, %v406
        %v409 = vmul.f32 %v408, 1.442695
        %v410 = vpow.pop %v409
        %v411 = vadd.f32 %v410, 1.0
        %v412 = vrcp.pop %v411
        %v413 = vmul.f32 %v411, %v412
        %v414 = vsub.f32 1.0, %v413
        %v415 = vmul.f32 %v412, %v414
        %v416 = vadd.f32 %v412, %v415
        %vm417 = vweird.f32 %v411
        %vm418 = vweird.f32 %v412
        %vm419 = vmor %vm417, %vm418
        %v420 = vsel %vm419, %v412, %v416
        %v421 = vand.u32 2147483647, %v411
        %vm422 = vcmp.eq.f32.partialorder %v421, 8.507059e+37
        %v423 = vand.u32 %v411, 2147483648
        %v424 = vor.u32 1.1754944e-38, %v423
        %v425 = vsel %vm422, %v424, %v420
        %v426 = vperm.slane %v425, 0
        %v427 = vlaneseq
        %v428 = vshrl.u32 %v427, 7
        %430 = vset.pattern.permute.xlu0 %v428
        %431 = vperm.xlu0 %430, %v426
        %v432 = vpop.permute.xlu0 %431
        %v433 = vlaneseq
        %v434 = vshrl.u32 %v433, 7
        %v435 = vadd.s32 %v434, 8
        %436 = vset.pattern.permute.xlu0 %v435
        %437 = vperm.xlu0 %436, %v426
        %v438 = vpop.permute.xlu0 %437
        %v439 = vlaneseq
        %v440 = vshrl.u32 %v439, 7
        %v441 = vadd.s32 %v440, 16
        %442 = vset.pattern.permute.xlu0 %v441
        %443 = vperm.xlu0 %442, %v426
        %v444 = vpop.permute.xlu0 %443
        %v445 = vlaneseq
        %v446 = vshrl.u32 %v445, 7
        %v447 = vadd.s32 %v446, 24
        %448 = vset.pattern.permute.xlu0 %v447
        %449 = vperm.xlu0 %448, %v426
        %v450 = vpop.permute.xlu0 %449
        %v451 = vperm.slane %v425, 1
        %v452 = vlaneseq
        %v453 = vshrl.u32 %v452, 7
        %455 = vset.pattern.permute.xlu0 %v453
        %456 = vperm.xlu0 %455, %v451
        %v457 = vpop.permute.xlu0 %456
        %v458 = vlaneseq
        %v459 = vshrl.u32 %v458, 7
        %v460 = vadd.s32 %v459, 8
        %461 = vset.pattern.permute.xlu0 %v460
        %462 = vperm.xlu0 %461, %v451
        %v463 = vpop.permute.xlu0 %462
        %v464 = vlaneseq
        %v465 = vshrl.u32 %v464, 7
        %v466 = vadd.s32 %v465, 16
        %467 = vset.pattern.permute.xlu0 %v466
        %468 = vperm.xlu0 %467, %v451
        %v469 = vpop.permute.xlu0 %468
        %v470 = vlaneseq
        %v471 = vshrl.u32 %v470, 7
        %v472 = vadd.s32 %v471, 24
        %473 = vset.pattern.permute.xlu0 %v472
        %474 = vperm.xlu0 %473, %v451
        %v475 = vpop.permute.xlu0 %474
        %v476 = vmul.f32 %v432, %v248
        %v477 = vmul.f32 %v432, %v249
        %v478 = vmul.f32 %v438, %v250
        %v479 = vmul.f32 %v438, %v251
        %v480 = vmul.f32 %v444, %v252
        %v481 = vmul.f32 %v444, %v253
        %v482 = vmul.f32 %v450, %v254
        %v483 = vmul.f32 %v450, %v255
        %v484 = vmul.f32 %v457, %v256
        %v485 = vmul.f32 %v457, %v257
        %v486 = vmul.f32 %v463, %v258
        %v487 = vmul.f32 %v463, %v259
        %v488 = vmul.f32 %v469, %v260
        %v489 = vmul.f32 %v469, %v261
        %v490 = vmul.f32 %v475, %v262
        %v491 = vmul.f32 %v475, %v263
        %492 = vst [vmem:[%s245] sm:$0xff] %v476
        %493 = vst [vmem:[%s245 + $0x8] sm:$0xff] %v477
        %494 = vst [vmem:[%s245 + $0x10] sm:$0xff] %v478
        %495 = vst [vmem:[%s245 + $0x18] sm:$0xff] %v479
        %496 = vst [vmem:[%s245 + $0x20] sm:$0xff] %v480
        %497 = vst [vmem:[%s245 + $0x28] sm:$0xff] %v481
        %498 = vst [vmem:[%s245 + $0x30] sm:$0xff] %v482
        %499 = vst [vmem:[%s245 + $0x38] sm:$0xff] %v483
        %500 = vst [vmem:[%s245 + $0x40] sm:$0xff] %v484
        %501 = vst [vmem:[%s245 + $0x48] sm:$0xff] %v485
        %502 = vst [vmem:[%s245 + $0x50] sm:$0xff] %v486
        %503 = vst [vmem:[%s245 + $0x58] sm:$0xff] %v487
        %504 = vst [vmem:[%s245 + $0x60] sm:$0xff] %v488
        %505 = vst [vmem:[%s245 + $0x68] sm:$0xff] %v489
        %506 = vst [vmem:[%s245 + $0x70] sm:$0xff] %v490
        %507 = vst [vmem:[%s245 + $0x78] sm:$0xff] %v491
        %s508 = sand.u32 %s140, 1
        %s509 = scalar_lea.sflag [#allocation4], %s508
        %s510 = sand.u32 %s140, 1
        %s511 = smul.addr %s510, 128
        %s512 = scalar_lea.vmem [#allocation5], %s511
        // Predicated region
        $region45: #{tpu_custom_call.1} parent=39 // pred_check
          %p513 = pneg %p150
        $region46: #{tpu_custom_call.1} parent=39 // pred_check_branch
          %515 = sbr.rel (%p513) target = $region48
        $region47: #{tpu_custom_call.1} parent=39 // pred_region
          %s516 = smul.u32 2, %s22
          %518 = vsyncadd %s509, 0
          %s519 = smul.addr %s516, 8
          %s520 = smul.addr %s519, 8
          %s521 = scalar_lea.hbm %s5, %s520
          %s522 = sshll.u32 %s512, 4
          %s523 = int_to_ptr.vmem [resolvable:$true] %s522
          %s524 = sshll.u32 %s521, 4
          %s525 = int_to_ptr.hbm [resolvable:$true] %s524
          %530 = dma.vmem_to_hbm [thread:$0]  %s523, 2048, %s525, %s509, 256, 256, 16
        $region48: #{tpu_custom_call.1} parent=39 // pred_fallthru
          _
      $region40: #{tpu_custom_call.1} parent=5 // pred_fallthru
        _
      %p531 = scmp.le.s32.totalorder 2, %s17
      // Predicated region
      $region49: #{tpu_custom_call.1} parent=5 // pred_check
        %p532 = pneg %p531
      $region50: #{tpu_custom_call.1} parent=5 // pred_check_branch
        %534 = sbr.rel (%p532) target = $region52
      $region51: #{tpu_custom_call.1} parent=5 // pred_region
        %s535 = ssub.s32 %s17, 2
        // Predicated region
        $region53: #{tpu_custom_call.1} parent=51 // pred_check
          %p536 = pneg %p156
        $region54: #{tpu_custom_call.1} parent=51 // pred_check_branch
          %538 = sbr.rel (%p536) target = $region56
        $region55: #{tpu_custom_call.1} parent=51 // pred_region
          %s539 = sand.u32 %s141, 1
          %s540 = scalar_lea.sflag [#allocation4], %s539
          %s541 = sand.u32 %s141, 1
          %s542 = smul.addr %s541, 128
          %s543 = scalar_lea.vmem [#allocation5], %s542
          %545 = dma.done %s540, 2048
        $region56: #{tpu_custom_call.1} parent=51 // pred_fallthru
          _
      $region52: #{tpu_custom_call.1} parent=5 // pred_fallthru
        _
    $region6: #{tpu_custom_call.1} parent=1 // loop_footer
      %s21 = sadd.s32 1, %s17
    $region7: #{tpu_custom_call.1} parent=1 // loop_footer_branch
      %16 = sbr.rel target = $region3
    $region8: #{tpu_custom_call.1} parent=1 // loop_exit
      _
    %546 = vsyncpa [#allocation3], 1
    %s547 = scalar_lea.sflag [#allocation3], 1
    %548 = vsyncpa %s547, 1
    %549 = vsyncpa [#allocation4], 1
    %s550 = scalar_lea.sflag [#allocation4], 1
    %551 = vsyncpa %s550, 1

</llo_original>
